<compile_context>
chip_gen: v5e
topology: v5e:2x2
jax: 0.10.0
libtpu: 0.0.40
codegen_flags: <defaults>
</compile_context>

<pallas_src>
import jax
import jax.numpy as jnp
from jax.experimental import pallas as pl
from jax.experimental.pallas import tpu as pltpu


def _elu(x, alpha):
    return jnp.where(x > 0, x, alpha * (jnp.exp(x) - 1.0))


def _make_kernel(tile_t, alpha, compute_dtype):
    def kernel(x_ref, halo_ref, w1_ref, b1_ref, w2_ref, b2_ref, out_ref):
        # x block: (1, C, TT) — channels on sublanes, time on lanes (lane-dense).
        x = x_ref[0].astype(jnp.float32)                       # (C, TT)
        a = _elu(x, alpha)                                      # ELU in f32

        # Halo block: (1, 1, C, 2) raw x columns [left-neighbour, right-neighbour]
        # (reflect values for the first/last tile were baked in by the wrapper).
        halo = _elu(halo_ref[0, 0].astype(jnp.float32), alpha)  # (C, 2)
        left_col = halo[:, 0:1]                                 # (C, 1)
        right_col = halo[:, 1:2]                                # (C, 1)

        # K=3, dilation=1 taps as cyclic lane rotations (XLU) + single-column fixups.
        # np.roll convention: shift=+1 => out[:, t] = a[:, t-1]. Shifts must be >= 0.
        nb_l = pltpu.roll(a, 1, 1)                              # col 0 is bogus (cyclic)
        nb_r = pltpu.roll(a, tile_t - 1, 1)                     # col TT-1 is bogus

        lane = jax.lax.broadcasted_iota(jnp.int32, (1, tile_t), 1)
        left = jnp.where(lane == 0, left_col, nb_l).astype(compute_dtype)
        right = jnp.where(lane == tile_t - 1, right_col, nb_r).astype(compute_dtype)
        center = a.astype(compute_dtype)

        # conv1: three (H, C) @ (C, TT) MXU dots, f32 accumulation (N = TT lane-dense).
        acc = jnp.dot(w1_ref[0], left, preferred_element_type=jnp.float32)
        acc += jnp.dot(w1_ref[1], center, preferred_element_type=jnp.float32)
        acc += jnp.dot(w1_ref[2], right, preferred_element_type=jnp.float32)
        h1 = _elu(acc + b1_ref[...], alpha).astype(compute_dtype)   # (H, TT)

        # conv2: pointwise (C, H) @ (H, TT), f32 accumulation + bias.
        y = jnp.dot(w2_ref[...], h1, preferred_element_type=jnp.float32) + b2_ref[...]

        # true_skip residual in f32.
        out_ref[0] = (x + y).astype(out_ref.dtype)

    return kernel


def _choose_tile_t(C, T, *, budget_bytes=24 << 20, max_tile=2048):
    """Largest lane-aligned time tile that divides T and keeps VMEM under budget.

    Budget counts ~2x double-buffered in/out blocks plus ~6 full-tile f32 temporaries.
    """
    if T % 128 != 0:
        return T                      # single full-dim tile (always a legal block)
    bytes_per_frame = 10 * C * 4
    tt = (budget_bytes // bytes_per_frame) // 128 * 128
    tt = max(128, min(int(tt), max_tile))
    while tt > 128 and T % tt != 0:
        tt -= 128
    return tt if T % tt == 0 else T


def seanet_resnet_block(x_bct, w1, b1, w2, b2, *, kernel_sizes=(3, 1), dilations=(1, 1),
                        alpha=1.0, compute_dtype=jnp.float32, tile_t=None,
                        vmem_limit_bytes=None):
    """SEANet residual block forward.

    x_bct: (B, C, T) — PyTorch conv1d layout (f32 or bf16 storage; compute stays f32).
    w1:    (K1, hidden, C)  conv1 weight, one (H, C) matrix per tap.
    b1:    (hidden,)        conv1 bias.
    w2:    (C, hidden)      conv2 (pointwise) weight.
    b2:    (C,)             conv2 bias.
    compute_dtype: MXU operand dtype (jnp.float32 default; bf16 only pays off for C,H >= ~128).
    tile_t: time-tile size (multiple of 128 dividing T); None -> VMEM-budgeted default.
    """
    B, C, T = x_bct.shape
    K1, K2 = kernel_sizes
    d1, d2 = dilations
    assert K1 == 3 and d1 == 1, "kernel implements the standard (K=3, dilation=1) first conv"
    assert K2 == 1 and d2 == 1, "second conv of the standard block is pointwise"
    assert T >= 2, "reflect padding needs at least 2 frames"
    H = w1.shape[1]

    if tile_t is None:
        tile_t = _choose_tile_t(C, T)
    assert T % tile_t == 0, "tile_t must divide T"
    n_tiles = T // tile_t

    # Tiny halo side-input: for each tile, the raw x column just left / just right of the
    # tile, with the reflect substitution (x[:,1] / x[:,T-2]) baked in for edge tiles.
    tile_ids = jnp.arange(n_tiles)
    idx_left = jnp.where(tile_ids == 0, 1, tile_ids * tile_t - 1)
    idx_right = jnp.where(tile_ids == n_tiles - 1, T - 2, (tile_ids + 1) * tile_t)
    idx = jnp.stack([idx_left, idx_right], axis=-1)                 # (n_tiles, 2)
    halo = jnp.transpose(x_bct[:, :, idx], (0, 2, 1, 3))            # (B, n_tiles, C, 2)

    # Pre-cast / reshape parameters once in the wrapper (no per-step casts in the kernel).
    w1_c = w1.astype(compute_dtype)                                 # (K1, H, C)
    w2_c = w2.astype(compute_dtype)                                 # (C, H)
    b1_2d = b1.reshape(H, 1).astype(jnp.float32)
    b2_2d = b2.reshape(C, 1).astype(jnp.float32)

    kernel = _make_kernel(tile_t, alpha, compute_dtype)

    cp_kwargs = dict(dimension_semantics=("parallel", "parallel"))
    if vmem_limit_bytes is not None:
        cp_kwargs["vmem_limit_bytes"] = int(vmem_limit_bytes)

    out = pl.pallas_call(
        kernel,
        out_shape=jax.ShapeDtypeStruct((B, C, T), x_bct.dtype),
        grid_spec=pltpu.PrefetchScalarGridSpec(
            num_scalar_prefetch=0,
            grid=(B, n_tiles),
            in_specs=[
                pl.BlockSpec((1, C, tile_t), lambda b, j: (b, 0, j)),   # activations
                pl.BlockSpec((1, 1, C, 2), lambda b, j: (b, j, 0, 0)),  # halo columns
                pl.BlockSpec((K1, H, C), lambda b, j: (0, 0, 0)),       # conv1 weight (resident)
                pl.BlockSpec((H, 1), lambda b, j: (0, 0)),              # conv1 bias
                pl.BlockSpec((C, H), lambda b, j: (0, 0)),              # conv2 weight
                pl.BlockSpec((C, 1), lambda b, j: (0, 0)),              # conv2 bias
            ],
            out_specs=pl.BlockSpec((1, C, tile_t), lambda b, j: (b, 0, j)),
        ),
        compiler_params=pltpu.CompilerParams(**cp_kwargs),
    )(x_bct, halo, w1_c, b1_2d, w2_c, b2_2d)

    return out


def reference(x, w1_t, b1, w2_t, b2, K1, d1, alpha):
    """Pure-JAX reference in PyTorch layout. w1_t: (H, C, K1), w2_t: (C, H, 1)."""
    h = _elu(x, alpha)
    pad_total = (K1 - 1) * d1
    pr = pad_total // 2
    plft = pad_total - pr
    h = jnp.pad(h, ((0, 0), (0, 0), (plft, pr)), mode="reflect")
    y1 = jax.lax.conv_general_dilated(
        h, w1_t, window_strides=(1,), padding="VALID", rhs_dilation=(d1,),
        dimension_numbers=("NCW", "OIW", "NCW"))
    y1 = _elu(y1 + b1[None, :, None], alpha)
    y2 = jax.lax.conv_general_dilated(
        y1, w2_t, window_strides=(1,), padding="VALID",
        dimension_numbers=("NCW", "OIW", "NCW"))
    y2 = y2 + b2[None, :, None]
    return x + y2


if __name__ == "__main__":
    # Small deterministic configuration (lane-dense time axis).
    B, dim, T = 2, 32, 512
    compress = 2
    hidden = dim // compress                  # 16
    kernel_sizes = (3, 1)
    dilations = (1, 1)
    alpha = 1.0

    key = jax.random.PRNGKey(0)
    kx, k1, k2, k3, k4 = jax.random.split(key, 5)

    x = jax.random.normal(kx, (B, dim, T), dtype=jnp.float32)

    # torch-style conv weights: (out_ch, in_ch, K)
    w1_t = 0.1 * jax.random.normal(k1, (hidden, dim, kernel_sizes[0]), dtype=jnp.float32)
    b1 = 0.1 * jax.random.normal(k2, (hidden,), dtype=jnp.float32)
    w2_t = 0.1 * jax.random.normal(k3, (dim, hidden, kernel_sizes[1]), dtype=jnp.float32)
    b2 = 0.1 * jax.random.normal(k4, (dim,), dtype=jnp.float32)

    # kernel-layout weights: conv1 -> (K, Cout, Cin); conv2 -> (Cout, Cin)
    w1 = jnp.transpose(w1_t, (2, 0, 1))       # (K1, hidden, dim)
    w2 = w2_t[:, :, 0]                        # (dim, hidden)

    ref = jax.block_until_ready(
        reference(x, w1_t, b1, w2_t, b2, kernel_sizes[0], dilations[0], alpha))

    # Time-tiled path: grid = (B=2, T//128=4) -> 8 pipelined steps.
    out_tiled = jax.block_until_ready(
        seanet_resnet_block(x, w1, b1, w2, b2, kernel_sizes=kernel_sizes,
                            dilations=dilations, alpha=alpha, tile_t=128))
    assert out_tiled.shape == (B, dim, T)
    assert jnp.allclose(out_tiled, ref, rtol=1e-4, atol=1e-4), \
        "kernel mismatch vs reference (tiled)"

    # Auto-chosen tile (exercises the single-tile / edge-reflect path at this size).
    out_auto = jax.block_until_ready(
        seanet_resnet_block(x, w1, b1, w2, b2, kernel_sizes=kernel_sizes,
                            dilations=dilations, alpha=alpha))
    assert jnp.allclose(out_auto, ref, rtol=1e-4, atol=1e-4), \
        "kernel mismatch vs reference (auto tile)"

    print("KERNEL_OK")
</pallas_src>

<mosaic_0001>
module attributes {stable_mosaic.version = 11 : i64} {
  func.func @kernel(%arg0: i32, %arg1: i32, %arg2: memref<1x32x128xf32, #tpu.memory_space<vmem>>, %arg3: memref<1x1x32x2xf32, #tpu.memory_space<vmem>>, %arg4: memref<3x16x32xf32, #tpu.memory_space<vmem>>, %arg5: memref<16x1xf32, #tpu.memory_space<vmem>>, %arg6: memref<32x16xf32, #tpu.memory_space<vmem>>, %arg7: memref<32x1xf32, #tpu.memory_space<vmem>>, %arg8: memref<1x32x128xf32, #tpu.memory_space<vmem>>) attributes {dimension_semantics = [#tpu.dimension_semantics<parallel>, #tpu.dimension_semantics<parallel>], iteration_bounds = array<i64: 2, 4>, scalar_prefetch = 0 : i64, scratch_operands = 0 : i64, tpu.core_type = #tpu.core_type<tc>, window_params = [{transform_indices = @transform_0, window_bounds = array<i64: 1, 32, 128>}, {transform_indices = @transform_1, window_bounds = array<i64: 1, 1, 32, 2>}, {pipeline_mode = #tpu.pipeline_mode<synchronous>, transform_indices = @transform_2, window_bounds = array<i64: 3, 16, 32>}, {pipeline_mode = #tpu.pipeline_mode<synchronous>, transform_indices = @transform_3, window_bounds = array<i64: 16, 1>}, {pipeline_mode = #tpu.pipeline_mode<synchronous>, transform_indices = @transform_4, window_bounds = array<i64: 32, 16>}, {pipeline_mode = #tpu.pipeline_mode<synchronous>, transform_indices = @transform_5, window_bounds = array<i64: 32, 1>}, {transform_indices = @transform_6, window_bounds = array<i64: 1, 32, 128>}]} {
    %c0 = arith.constant 0 : index
    %c0_0 = arith.constant 0 : index
    %c0_1 = arith.constant 0 : index
    %0 = vector.load %arg2[%c0, %c0_0, %c0_1] : memref<1x32x128xf32, #tpu.memory_space<vmem>>, vector<1x32x128xf32>
    %1 = vector.shape_cast %0 : vector<1x32x128xf32> to vector<32x128xf32>
    %cst = arith.constant 0.000000e+00 : f32
    %2 = vector.broadcast %cst : f32 to vector<32x128xf32>
    %3 = arith.cmpf ogt, %1, %2 : vector<32x128xf32>
    %4 = math.exp %1 : vector<32x128xf32>
    %cst_2 = arith.constant 1.000000e+00 : f32
    %5 = vector.broadcast %cst_2 : f32 to vector<32x128xf32>
    %6 = arith.subf %4, %5 : vector<32x128xf32>
    %cst_3 = arith.constant 1.000000e+00 : f32
    %7 = vector.broadcast %cst_3 : f32 to vector<32x128xf32>
    %8 = arith.mulf %7, %6 : vector<32x128xf32>
    %9 = arith.select %3, %1, %8 : vector<32x128xi1>, vector<32x128xf32>
    %c0_4 = arith.constant 0 : index
    %c0_5 = arith.constant 0 : index
    %c0_6 = arith.constant 0 : index
    %c0_7 = arith.constant 0 : index
    %10 = vector.load %arg3[%c0_4, %c0_5, %c0_6, %c0_7] : memref<1x1x32x2xf32, #tpu.memory_space<vmem>>, vector<1x1x32x2xf32>
    %11 = vector.shape_cast %10 : vector<1x1x32x2xf32> to vector<32x2xf32>
    %cst_8 = arith.constant 0.000000e+00 : f32
    %12 = vector.broadcast %cst_8 : f32 to vector<32x2xf32>
    %13 = arith.cmpf ogt, %11, %12 : vector<32x2xf32>
    %14 = math.exp %11 : vector<32x2xf32>
    %cst_9 = arith.constant 1.000000e+00 : f32
    %15 = vector.broadcast %cst_9 : f32 to vector<32x2xf32>
    %16 = arith.subf %14, %15 : vector<32x2xf32>
    %cst_10 = arith.constant 1.000000e+00 : f32
    %17 = vector.broadcast %cst_10 : f32 to vector<32x2xf32>
    %18 = arith.mulf %17, %16 : vector<32x2xf32>
    %19 = arith.select %13, %11, %18 : vector<32x2xi1>, vector<32x2xf32>
    %20 = vector.extract_strided_slice %19 {offsets = [0, 0], sizes = [32, 1], strides = [1, 1]} : vector<32x2xf32> to vector<32x1xf32>
    %21 = vector.extract_strided_slice %19 {offsets = [0, 1], sizes = [32, 1], strides = [1, 1]} : vector<32x2xf32> to vector<32x1xf32>
    %c1_i32 = arith.constant 1 : i32
    %22 = tpu.dynamic_rotate %9 by %c1_i32 dim 1 : vector<32x128xf32>, i32 -> vector<32x128xf32>
    %c127_i32 = arith.constant 127 : i32
    %23 = tpu.dynamic_rotate %9 by %c127_i32 dim 1 : vector<32x128xf32>, i32 -> vector<32x128xf32>
    %24 = tpu.iota {dimensions = array<i32: 1>} : vector<1x128xi32>
    %c0_i32 = arith.constant 0 : i32
    %25 = vector.broadcast %c0_i32 : i32 to vector<1x128xi32>
    %26 = arith.cmpi eq, %24, %25 : vector<1x128xi32>
    %27 = vector.shape_cast %26 : vector<1x128xi1> to vector<1x128xi1>
    %28 = vector.broadcast %27 : vector<1x128xi1> to vector<32x128xi1>
    %29 = vector.shape_cast %20 : vector<32x1xf32> to vector<32x1xf32>
    %30 = vector.broadcast %29 : vector<32x1xf32> to vector<32x128xf32>
    %31 = arith.select %28, %30, %22 : vector<32x128xi1>, vector<32x128xf32>
    %c127_i32_11 = arith.constant 127 : i32
    %32 = vector.broadcast %c127_i32_11 : i32 to vector<1x128xi32>
    %33 = arith.cmpi eq, %24, %32 : vector<1x128xi32>
    %34 = vector.shape_cast %33 : vector<1x128xi1> to vector<1x128xi1>
    %35 = vector.broadcast %34 : vector<1x128xi1> to vector<32x128xi1>
    %36 = vector.shape_cast %21 : vector<32x1xf32> to vector<32x1xf32>
    %37 = vector.broadcast %36 : vector<32x1xf32> to vector<32x128xf32>
    %38 = arith.select %35, %37, %23 : vector<32x128xi1>, vector<32x128xf32>
    %c0_12 = arith.constant 0 : index
    %c0_13 = arith.constant 0 : index
    %c0_14 = arith.constant 0 : index
    %39 = vector.load %arg4[%c0_12, %c0_13, %c0_14] : memref<3x16x32xf32, #tpu.memory_space<vmem>>, vector<1x16x32xf32>
    %40 = vector.shape_cast %39 : vector<1x16x32xf32> to vector<16x32xf32>
    %cst_15 = arith.constant dense<0.000000e+00> : vector<16x128xf32>
    %41 = tpu.matmul %40, %31, %cst_15 {dimension_numbers = #tpu.dot_dimension_numbers<[1], [0], [0], [1], [0, 0, 1, 1], [], []>} : vector<16x32xf32>, vector<32x128xf32>, vector<16x128xf32> -> vector<16x128xf32>
    %c1 = arith.constant 1 : index
    %c0_16 = arith.constant 0 : index
    %c0_17 = arith.constant 0 : index
    %42 = vector.load %arg4[%c1, %c0_16, %c0_17] : memref<3x16x32xf32, #tpu.memory_space<vmem>>, vector<1x16x32xf32>
    %43 = vector.shape_cast %42 : vector<1x16x32xf32> to vector<16x32xf32>
    %cst_18 = arith.constant dense<0.000000e+00> : vector<16x128xf32>
    %44 = tpu.matmul %43, %9, %cst_18 {dimension_numbers = #tpu.dot_dimension_numbers<[1], [0], [0], [1], [0, 0, 1, 1], [], []>} : vector<16x32xf32>, vector<32x128xf32>, vector<16x128xf32> -> vector<16x128xf32>
    %45 = arith.addf %41, %44 : vector<16x128xf32>
    %c2 = arith.constant 2 : index
    %c0_19 = arith.constant 0 : index
    %c0_20 = arith.constant 0 : index
    %46 = vector.load %arg4[%c2, %c0_19, %c0_20] : memref<3x16x32xf32, #tpu.memory_space<vmem>>, vector<1x16x32xf32>
    %47 = vector.shape_cast %46 : vector<1x16x32xf32> to vector<16x32xf32>
    %cst_21 = arith.constant dense<0.000000e+00> : vector<16x128xf32>
    %48 = tpu.matmul %47, %38, %cst_21 {dimension_numbers = #tpu.dot_dimension_numbers<[1], [0], [0], [1], [0, 0, 1, 1], [], []>} : vector<16x32xf32>, vector<32x128xf32>, vector<16x128xf32> -> vector<16x128xf32>
    %49 = arith.addf %45, %48 : vector<16x128xf32>
    %c0_22 = arith.constant 0 : index
    %c0_23 = arith.constant 0 : index
    %50 = vector.load %arg5[%c0_22, %c0_23] : memref<16x1xf32, #tpu.memory_space<vmem>>, vector<16x1xf32>
    %51 = vector.broadcast %50 : vector<16x1xf32> to vector<16x128xf32>
    %52 = arith.addf %49, %51 : vector<16x128xf32>
    %cst_24 = arith.constant 0.000000e+00 : f32
    %53 = vector.broadcast %cst_24 : f32 to vector<16x128xf32>
    %54 = arith.cmpf ogt, %52, %53 : vector<16x128xf32>
    %55 = math.exp %52 : vector<16x128xf32>
    %cst_25 = arith.constant 1.000000e+00 : f32
    %56 = vector.broadcast %cst_25 : f32 to vector<16x128xf32>
    %57 = arith.subf %55, %56 : vector<16x128xf32>
    %cst_26 = arith.constant 1.000000e+00 : f32
    %58 = vector.broadcast %cst_26 : f32 to vector<16x128xf32>
    %59 = arith.mulf %58, %57 : vector<16x128xf32>
    %60 = arith.select %54, %52, %59 : vector<16x128xi1>, vector<16x128xf32>
    %c0_27 = arith.constant 0 : index
    %c0_28 = arith.constant 0 : index
    %61 = vector.load %arg6[%c0_27, %c0_28] : memref<32x16xf32, #tpu.memory_space<vmem>>, vector<32x16xf32>
    %cst_29 = arith.constant dense<0.000000e+00> : vector<32x128xf32>
    %62 = tpu.matmul %61, %60, %cst_29 {dimension_numbers = #tpu.dot_dimension_numbers<[1], [0], [0], [1], [0, 0, 1, 1], [], []>} : vector<32x16xf32>, vector<16x128xf32>, vector<32x128xf32> -> vector<32x128xf32>
    %c0_30 = arith.constant 0 : index
    %c0_31 = arith.constant 0 : index
    %63 = vector.load %arg7[%c0_30, %c0_31] : memref<32x1xf32, #tpu.memory_space<vmem>>, vector<32x1xf32>
    %64 = vector.broadcast %63 : vector<32x1xf32> to vector<32x128xf32>
    %65 = arith.addf %62, %64 : vector<32x128xf32>
    %66 = arith.addf %1, %65 : vector<32x128xf32>
    %c0_32 = arith.constant 0 : index
    %c0_33 = arith.constant 0 : index
    %c0_34 = arith.constant 0 : index
    %67 = vector.load %arg8[%c0_32, %c0_33, %c0_34] : memref<1x32x128xf32, #tpu.memory_space<vmem>>, vector<1x32x128xf32>
    %68 = vector.shape_cast %67 : vector<1x32x128xf32> to vector<32x128xf32>
    %69 = vector.shape_cast %66 : vector<32x128xf32> to vector<1x32x128xf32>
    tpu.vector_store %arg8[%c0_32, %c0_33, %c0_34], %69 {strides = array<i32>} : memref<1x32x128xf32, #tpu.memory_space<vmem>>, vector<1x32x128xf32>,
    return
  }
  func.func @transform_0(%arg0: i32, %arg1: i32) -> (i32, i32, i32) {
    %c0_i32 = arith.constant 0 : i32
    %c0_i32_0 = arith.constant 0 : i32
    return %arg0, %c0_i32, %arg1 : i32, i32, i32
  }
  func.func @transform_1(%arg0: i32, %arg1: i32) -> (i32, i32, i32, i32) {
    %c0_i32 = arith.constant 0 : i32
    %c0_i32_0 = arith.constant 0 : i32
    %c0_i32_1 = arith.constant 0 : i32
    return %arg0, %arg1, %c0_i32, %c0_i32_0 : i32, i32, i32, i32
  }
  func.func @transform_2(%arg0: i32, %arg1: i32) -> (i32, i32, i32) {
    %c0_i32 = arith.constant 0 : i32
    %c0_i32_0 = arith.constant 0 : i32
    %c0_i32_1 = arith.constant 0 : i32
    %c0_i32_2 = arith.constant 0 : i32
    return %c0_i32, %c0_i32_0, %c0_i32_1 : i32, i32, i32
  }
  func.func @transform_3(%arg0: i32, %arg1: i32) -> (i32, i32) {
    %c0_i32 = arith.constant 0 : i32
    %c0_i32_0 = arith.constant 0 : i32
    %c0_i32_1 = arith.constant 0 : i32
    return %c0_i32, %c0_i32_0 : i32, i32
  }
  func.func @transform_4(%arg0: i32, %arg1: i32) -> (i32, i32) {
    %c0_i32 = arith.constant 0 : i32
    %c0_i32_0 = arith.constant 0 : i32
    %c0_i32_1 = arith.constant 0 : i32
    return %c0_i32, %c0_i32_0 : i32, i32
  }
  func.func @transform_5(%arg0: i32, %arg1: i32) -> (i32, i32) {
    %c0_i32 = arith.constant 0 : i32
    %c0_i32_0 = arith.constant 0 : i32
    %c0_i32_1 = arith.constant 0 : i32
    return %c0_i32, %c0_i32_0 : i32, i32
  }
  func.func @transform_6(%arg0: i32, %arg1: i32) -> (i32, i32, i32) {
    %c0_i32 = arith.constant 0 : i32
    %c0_i32_0 = arith.constant 0 : i32
    return %arg0, %c0_i32, %arg1 : i32, i32, i32
  }
}

</mosaic_0001>

<llo_original>
// kernel: tpu_custom_call.1
$region0: #{tpu_custom_call.1}
  #allocation0 [shape = 'u32[]', space=smem, size = 0x4, offset = 0x4, fixed_abs, tag = 'smem constant byte address 0x4 - core index']
  #allocation1 [shape = 'u32[72,128]{1,0:T(1,128)}', space=vmem, size = 0x9000, scoped, tag = 'internal scratch']
  %s0 = inlined_call_operand.vmem [shape: f32[2,32,512], index: 0, kind: input, shape index: {}]
  %s1 = inlined_call_operand.vmem [shape: f32[2,4,32,2], index: 1, kind: input, shape index: {}]
  %s2 = inlined_call_operand.vmem [shape: f32[3,16,32], index: 2, kind: input, shape index: {}]
  %s3 = inlined_call_operand.vmem [shape: f32[16,1], index: 3, kind: input, shape index: {}]
  %s4 = inlined_call_operand.vmem [shape: f32[32,16], index: 4, kind: input, shape index: {}]
  %s5 = inlined_call_operand.vmem [shape: f32[32,1], index: 5, kind: input, shape index: {}]
  %s6 = inlined_call_operand.hbm [shape: f32[2,32,512], index: 6, kind: output, shape index: {}]
  %s7 = sld [smem:[#allocation0]]
  $region95: #{tpu_custom_call.1} parent=0
    _
  %s9 = ssub.s32 1, %s7
  %s10 = scalar_select 0, %s9, %s7
  $region1: #{tpu_custom_call.1} parent=0
    #allocation2 [shape = 'u8[32768]{0}', space=vmem, size = 0x8000, scoped, tag = 'input window, operand 0']
    #allocation3 [shape = 'u8[32768]{0}', space=vmem, size = 0x8000, scoped, tag = 'output window, operand 0']
    #allocation4 [shape = 's32[2]{0}', space=sflag, size = 0x8, scoped, tag = 'scoped memory for tpu_custom_call.1']
    %11 = vsyncpa [#allocation4], 0
    %s12 = scalar_lea.sflag [#allocation4], 1
    %13 = vsyncpa %s12, 0
    loop: start=0, step=1, limit=10
    $region2: #{tpu_custom_call.1} parent=1 // loop_pre_header
      _
    $region3: #{tpu_custom_call.1} parent=1 // loop_header
      %s15 = sphi 0, %s19
      %p16 = scmp.ge.s32.totalorder %s15, 10
      %s22 = sphi 0, %s34
      %s23 = sphi 0, %s30
      %s24 = sphi 0, %s22
      %s25 = sphi 0, %s23
      %s26 = sphi 0, %s24
      %s27 = sphi 0, %s25
      %s39 = sphi 0, %s41
      %s42 = sphi 0, %s39
      %s43 = sphi 0, %s42
      %s59 = sphi 0, %s43
      %s67 = sphi 0, %s69
      %s70 = sphi 0, %s67
      %s71 = sphi 0, %s70
      %s87 = sphi 0, %s71
      %s91 = sphi 0, %s91
      %s93 = sphi 0, %s91
      %s94 = sphi 0, %s93
      %s108 = sphi 0, %s94
      %s112 = sphi 0, %s112
      %s114 = sphi 0, %s112
      %s115 = sphi 0, %s114
      %s129 = sphi 0, %s115
      %s133 = sphi 0, %s133
      %s135 = sphi 0, %s133
      %s136 = sphi 0, %s135
      %s150 = sphi 0, %s136
      %s154 = sphi 0, %s154
      %s156 = sphi 0, %s154
      %s157 = sphi 0, %s156
      %s171 = sphi 0, %s157
      %s179 = sphi 0, %s181
      %s182 = sphi 0, %s179
      %s183 = sphi 0, %s182
      %s199 = sphi 0, %s183
    $region4: #{tpu_custom_call.1} parent=1 // loop_header_branch
      %18 = sbr.rel (%p16) target = $region8
    $region5: #{tpu_custom_call.1} parent=1 // loop_body
      %s20 = ssub.s32 %s15, 1
      %s21 = ssub.s32 %s15, 2
      %s28 = sadd.s32 1, %s23
      %p29 = scmp.ge.s32.totalorder %s28, 4
      %s30 = scalar_select %p29, 0, %s28
      %s31 = sadd.s32 1, %s22
      %s32 = scalar_select %p29, %s31, %s22
      %p33 = scmp.ge.s32.totalorder %s32, 2
      %s34 = scalar_select %p33, 0, %s32
      %s35 = ssub.s32 %s22, %s34
      %s36 = ssub.s32 %s23, %s30
      %s37 = sor.u32 %s35, %s36
      %p38 = scmp.eq.s32.totalorder %s37, 0
      %s40 = sadd.s32 %s39, 1
      %s41 = scalar_select %p38, %s39, %s40
      %p44 = pneg %p38
      %p45 = scmp.eq.s32.totalorder %s15, 7
      %p46 = por %p44, %p45
      %p47 = scmp.ne.s32.totalorder %s39, %s42
      %p48 = scmp.eq.s32.totalorder %s15, 0
      %p49 = por %p47, %p48
      %p50 = scmp.ne.s32.totalorder %s39, %s42
      %p51 = scmp.eq.s32.totalorder %s20, 7
      %p52 = por %p50, %p51
      %p53 = scmp.ne.s32.totalorder %s42, %s43
      %p54 = scmp.eq.s32.totalorder %s20, 0
      %p55 = por %p53, %p54
      %p56 = scmp.ne.s32.totalorder %s42, %s43
      %p57 = scmp.eq.s32.totalorder %s21, 7
      %p58 = por %p56, %p57
      %p60 = scmp.ne.s32.totalorder %s43, %s59
      %p61 = scmp.eq.s32.totalorder %s21, 0
      %p62 = por %p60, %p61
      %s63 = ssub.s32 %s22, %s34
      %s64 = ssub.s32 %s23, %s30
      %s65 = sor.u32 %s63, %s64
      %p66 = scmp.eq.s32.totalorder %s65, 0
      %s68 = sadd.s32 %s67, 1
      %s69 = scalar_select %p66, %s67, %s68
      %p72 = pneg %p66
      %p73 = scmp.eq.s32.totalorder %s15, 7
      %p74 = por %p72, %p73
      %p75 = scmp.ne.s32.totalorder %s67, %s70
      %p76 = scmp.eq.s32.totalorder %s15, 0
      %p77 = por %p75, %p76
      %p78 = scmp.ne.s32.totalorder %s67, %s70
      %p79 = scmp.eq.s32.totalorder %s20, 7
      %p80 = por %p78, %p79
      %p81 = scmp.ne.s32.totalorder %s70, %s71
      %p82 = scmp.eq.s32.totalorder %s20, 0
      %p83 = por %p81, %p82
      %p84 = scmp.ne.s32.totalorder %s70, %s71
      %p85 = scmp.eq.s32.totalorder %s21, 7
      %p86 = por %p84, %p85
      %p88 = scmp.ne.s32.totalorder %s71, %s87
      %p89 = scmp.eq.s32.totalorder %s21, 0
      %p90 = por %p88, %p89
      %s92 = sadd.s32 %s91, 1
      %p95 = scmp.eq.s32.totalorder %s15, 7
      %p96 = scmp.ne.s32.totalorder %s91, %s93
      %p97 = scmp.eq.s32.totalorder %s15, 0
      %p98 = por %p96, %p97
      %p99 = scmp.ne.s32.totalorder %s91, %s93
      %p100 = scmp.eq.s32.totalorder %s20, 7
      %p101 = por %p99, %p100
      %p102 = scmp.ne.s32.totalorder %s93, %s94
      %p103 = scmp.eq.s32.totalorder %s20, 0
      %p104 = por %p102, %p103
      %p105 = scmp.ne.s32.totalorder %s93, %s94
      %p106 = scmp.eq.s32.totalorder %s21, 7
      %p107 = por %p105, %p106
      %p109 = scmp.ne.s32.totalorder %s94, %s108
      %p110 = scmp.eq.s32.totalorder %s21, 0
      %p111 = por %p109, %p110
      %s113 = sadd.s32 %s112, 1
      %p116 = scmp.eq.s32.totalorder %s15, 7
      %p117 = scmp.ne.s32.totalorder %s112, %s114
      %p118 = scmp.eq.s32.totalorder %s15, 0
      %p119 = por %p117, %p118
      %p120 = scmp.ne.s32.totalorder %s112, %s114
      %p121 = scmp.eq.s32.totalorder %s20, 7
      %p122 = por %p120, %p121
      %p123 = scmp.ne.s32.totalorder %s114, %s115
      %p124 = scmp.eq.s32.totalorder %s20, 0
      %p125 = por %p123, %p124
      %p126 = scmp.ne.s32.totalorder %s114, %s115
      %p127 = scmp.eq.s32.totalorder %s21, 7
      %p128 = por %p126, %p127
      %p130 = scmp.ne.s32.totalorder %s115, %s129
      %p131 = scmp.eq.s32.totalorder %s21, 0
      %p132 = por %p130, %p131
      %s134 = sadd.s32 %s133, 1
      %p137 = scmp.eq.s32.totalorder %s15, 7
      %p138 = scmp.ne.s32.totalorder %s133, %s135
      %p139 = scmp.eq.s32.totalorder %s15, 0
      %p140 = por %p138, %p139
      %p141 = scmp.ne.s32.totalorder %s133, %s135
      %p142 = scmp.eq.s32.totalorder %s20, 7
      %p143 = por %p141, %p142
      %p144 = scmp.ne.s32.totalorder %s135, %s136
      %p145 = scmp.eq.s32.totalorder %s20, 0
      %p146 = por %p144, %p145
      %p147 = scmp.ne.s32.totalorder %s135, %s136
      %p148 = scmp.eq.s32.totalorder %s21, 7
      %p149 = por %p147, %p148
      %p151 = scmp.ne.s32.totalorder %s136, %s150
      %p152 = scmp.eq.s32.totalorder %s21, 0
      %p153 = por %p151, %p152
      %s155 = sadd.s32 %s154, 1
      %p158 = scmp.eq.s32.totalorder %s15, 7
      %p159 = scmp.ne.s32.totalorder %s154, %s156
      %p160 = scmp.eq.s32.totalorder %s15, 0
      %p161 = por %p159, %p160
      %p162 = scmp.ne.s32.totalorder %s154, %s156
      %p163 = scmp.eq.s32.totalorder %s20, 7
      %p164 = por %p162, %p163
      %p165 = scmp.ne.s32.totalorder %s156, %s157
      %p166 = scmp.eq.s32.totalorder %s20, 0
      %p167 = por %p165, %p166
      %p168 = scmp.ne.s32.totalorder %s156, %s157
      %p169 = scmp.eq.s32.totalorder %s21, 7
      %p170 = por %p168, %p169
      %p172 = scmp.ne.s32.totalorder %s157, %s171
      %p173 = scmp.eq.s32.totalorder %s21, 0
      %p174 = por %p172, %p173
      %s175 = ssub.s32 %s22, %s34
      %s176 = ssub.s32 %s23, %s30
      %s177 = sor.u32 %s175, %s176
      %p178 = scmp.eq.s32.totalorder %s177, 0
      %s180 = sadd.s32 %s179, 1
      %s181 = scalar_select %p178, %s179, %s180
      %p184 = pneg %p178
      %p185 = scmp.eq.s32.totalorder %s15, 7
      %p186 = por %p184, %p185
      %p187 = scmp.ne.s32.totalorder %s179, %s182
      %p188 = scmp.eq.s32.totalorder %s15, 0
      %p189 = por %p187, %p188
      %p190 = scmp.ne.s32.totalorder %s179, %s182
      %p191 = scmp.eq.s32.totalorder %s20, 7
      %p192 = por %p190, %p191
      %p193 = scmp.ne.s32.totalorder %s182, %s183
      %p194 = scmp.eq.s32.totalorder %s20, 0
      %p195 = por %p193, %p194
      %p196 = scmp.ne.s32.totalorder %s182, %s183
      %p197 = scmp.eq.s32.totalorder %s21, 7
      %p198 = por %p196, %p197
      %p200 = scmp.ne.s32.totalorder %s183, %s199
      %p201 = scmp.eq.s32.totalorder %s21, 0
      %p202 = por %p200, %p201
      %p203 = scmp.le.s32.totalorder 1, %s15
      %p204 = scmp.lt.s32.totalorder %s15, 9
      %p205 = pnand %p203, %p204
      %p206 = pneg %p205
      // Predicated region
      $region9: #{tpu_custom_call.1} parent=5 // pred_check
        _
      $region10: #{tpu_custom_call.1} parent=5 // pred_check_branch
        %208 = sbr.rel (%p205) target = $region12
      $region11: #{tpu_custom_call.1} parent=5 // pred_region
        %s209 = ssub.s32 %s15, 1
        // Predicated region
        $region13: #{tpu_custom_call.1} parent=11 // pred_check
          %p210 = pneg %p104
        $region14: #{tpu_custom_call.1} parent=11 // pred_check_branch
          %212 = sbr.rel (%p210) target = $region16
        $region15: #{tpu_custom_call.1} parent=11 // pred_region
          _
        $region16: #{tpu_custom_call.1} parent=11 // pred_fallthru
          _
        // Predicated region
        $region17: #{tpu_custom_call.1} parent=11 // pred_check
          %p213 = pneg %p125
        $region18: #{tpu_custom_call.1} parent=11 // pred_check_branch
          %215 = sbr.rel (%p213) target = $region20
        $region19: #{tpu_custom_call.1} parent=11 // pred_region
          _
        $region20: #{tpu_custom_call.1} parent=11 // pred_fallthru
          _
        // Predicated region
        $region21: #{tpu_custom_call.1} parent=11 // pred_check
          %p216 = pneg %p146
        $region22: #{tpu_custom_call.1} parent=11 // pred_check_branch
          %218 = sbr.rel (%p216) target = $region24
        $region23: #{tpu_custom_call.1} parent=11 // pred_region
          _
        $region24: #{tpu_custom_call.1} parent=11 // pred_fallthru
          _
        // Predicated region
        $region25: #{tpu_custom_call.1} parent=11 // pred_check
          %p219 = pneg %p167
        $region26: #{tpu_custom_call.1} parent=11 // pred_check_branch
          %221 = sbr.rel (%p219) target = $region28
        $region27: #{tpu_custom_call.1} parent=11 // pred_region
          _
        $region28: #{tpu_custom_call.1} parent=11 // pred_fallthru
          _
      $region12: #{tpu_custom_call.1} parent=5 // pred_fallthru
        _
      %p222 = scmp.lt.s32.totalorder %s15, 8
      // Predicated region
      $region29: #{tpu_custom_call.1} parent=5 // pred_check
        %p223 = pneg %p222
      $region30: #{tpu_custom_call.1} parent=5 // pred_check_branch
        %225 = sbr.rel (%p223) target = $region32
      $region31: #{tpu_custom_call.1} parent=5 // pred_region
        // Predicated region
        $region33: #{tpu_custom_call.1} parent=31 // pred_check
          %p226 = pneg %p49
        $region34: #{tpu_custom_call.1} parent=31 // pred_check_branch
          %228 = sbr.rel (%p226) target = $region36
        $region35: #{tpu_custom_call.1} parent=31 // pred_region
          %s229 = sand.u32 %s39, 1
          %s230 = sand.u32 %s39, 1
          %s231 = smul.addr %s230, 32
          %s232 = scalar_lea.vmem [#allocation2], %s231
          %s233 = smul.addr %s22, 16
          %s234 = sadd.s32 %s23, %s233
          %s235 = smul.addr %s234, 8
          %s236 = scalar_lea.vmem %s0, %s235
          // Predicated region
          $region37: #{tpu_custom_call.1} parent=35 // pred_check
            _
          $region38: #{tpu_custom_call.1} parent=35 // pred_check_branch
            %238 = sbr.rel (0) target = $region40
          $region39: #{tpu_custom_call.1} parent=35 // pred_region
            // Predicated region
            $region41: #{tpu_custom_call.1} parent=39 // pred_check
              _
            $region42: #{tpu_custom_call.1} parent=39 // pred_check_branch
              %240 = sbr.rel (0) target = $region44
            $region43: #{tpu_custom_call.1} parent=39 // pred_region
              // Predicated region
              $region56: #{tpu_custom_call.1} parent=43 // pred_check
                _
              $region57: #{tpu_custom_call.1} parent=43 // pred_check_branch
                %262 = sbr.rel (0) target = $region59
              $region58: #{tpu_custom_call.1} parent=43 // pred_region
                loop: start=0, step=1, limit=1
                $region60: #{tpu_custom_call.1} parent=58 // loop_pre_header
                  _
                $region61: #{tpu_custom_call.1} parent=58 // loop_header
                  %s264 = sphi 0, %s268
                  %p265 = scmp.ge.s32.totalorder %s264, 1
                  %s269 = sphi %s236, %s236
                  %s270 = sphi %s232, %s232
                $region62: #{tpu_custom_call.1} parent=58 // loop_header_branch
                  %267 = sbr.rel (%p265) target = $region66
                $region63: #{tpu_custom_call.1} parent=58 // loop_body
                  %v271 = vld [vmem:[%s269] sm:$0xff]
                  %272 = vst [vmem:[%s270] sm:$0xff] %v271
                  %v273 = vld [vmem:[%s269 + $0x20] sm:$0xff]
                  %274 = vst [vmem:[%s270 + $0x8] sm:$0xff] %v273
                  %v275 = vld [vmem:[%s269 + $0x40] sm:$0xff]
                  %276 = vst [vmem:[%s270 + $0x10] sm:$0xff] %v275
                  %v277 = vld [vmem:[%s269 + $0x60] sm:$0xff]
                  %278 = vst [vmem:[%s270 + $0x18] sm:$0xff] %v277
                $region64: #{tpu_custom_call.1} parent=58 // loop_footer
                  %s268 = sadd.s32 1, %s264
                $region65: #{tpu_custom_call.1} parent=58 // loop_footer_branch
                  %263 = sbr.rel target = $region61
                $region66: #{tpu_custom_call.1} parent=58 // loop_exit
                  _
              $region59: #{tpu_custom_call.1} parent=43 // pred_fallthru
                _
              // Predicated region
              $region67: #{tpu_custom_call.1} parent=43 // pred_check
                _
              $region68: #{tpu_custom_call.1} parent=43 // pred_check_branch
                %280 = sbr.rel target = $region70
              $region69: #{tpu_custom_call.1} parent=43 // pred_region
                _
              $region70: #{tpu_custom_call.1} parent=43 // pred_fallthru
                _
            $region44: #{tpu_custom_call.1} parent=39 // pred_fallthru
              _
            // Predicated region
            $region45: #{tpu_custom_call.1} parent=39 // pred_check
              _
            $region46: #{tpu_custom_call.1} parent=39 // pred_check_branch
              %242 = sbr.rel target = $region48
            $region47: #{tpu_custom_call.1} parent=39 // pred_region
              %s244 = ssub.s32 256, 1
              loop: start=0, step=1, limit=1
              $region49: #{tpu_custom_call.1} parent=47 // loop_pre_header
                _
              $region50: #{tpu_custom_call.1} parent=47 // loop_header
                %s246 = sphi 0, %s250
                %p247 = scmp.ge.s32.totalorder %s246, 1
                %s251 = sphi %s236, %s236
                %s252 = sphi %s232, %s232
              $region51: #{tpu_custom_call.1} parent=47 // loop_header_branch
                %249 = sbr.rel (%p247) target = $region55
              $region52: #{tpu_custom_call.1} parent=47 // loop_body
                %v253 = vld [vmem:[%s251] sm:%s244]
                %254 = vst [vmem:[%s252] sm:%s244] %v253
                %v255 = vld [vmem:[%s251 + $0x20] sm:%s244]
                %256 = vst [vmem:[%s252 + $0x8] sm:%s244] %v255
                %v257 = vld [vmem:[%s251 + $0x40] sm:%s244]
                %258 = vst [vmem:[%s252 + $0x10] sm:%s244] %v257
                %v259 = vld [vmem:[%s251 + $0x60] sm:%s244]
                %260 = vst [vmem:[%s252 + $0x18] sm:%s244] %v259
              $region53: #{tpu_custom_call.1} parent=47 // loop_footer
                %s250 = sadd.s32 1, %s246
              $region54: #{tpu_custom_call.1} parent=47 // loop_footer_branch
                %245 = sbr.rel target = $region50
              $region55: #{tpu_custom_call.1} parent=47 // loop_exit
                _
            $region48: #{tpu_custom_call.1} parent=39 // pred_fallthru
              _
          $region40: #{tpu_custom_call.1} parent=35 // pred_fallthru
            _
          %281 = vnop
        $region36: #{tpu_custom_call.1} parent=31 // pred_fallthru
          _
        // Predicated region
        $region71: #{tpu_custom_call.1} parent=31 // pred_check
          %p282 = pneg %p77
        $region72: #{tpu_custom_call.1} parent=31 // pred_check_branch
          %284 = sbr.rel (%p282) target = $region74
        $region73: #{tpu_custom_call.1} parent=31 // pred_region
          %p285 = scmp.lt.s32.totalorder %s22, 1
          %s286 = scalar_select %p285, %s22, 1
          %p287 = scmp.lt.s32.totalorder %s23, 3
          %s288 = scalar_select %p287, %s23, 3
          %s289 = smul.addr %s288, 4
          %s290 = smul.addr %s286, 16
          %s291 = sadd.s32 %s289, %s290
          %s292 = smul.addr %s291, 8
          %s293 = scalar_lea.vmem %s1, %s292
        $region74: #{tpu_custom_call.1} parent=31 // pred_fallthru
          _
      $region32: #{tpu_custom_call.1} parent=5 // pred_fallthru
        _
      %p294 = scmp.le.s32.totalorder 1, %s15
      %p295 = scmp.lt.s32.totalorder %s15, 9
      %p296 = pnand %p294, %p295
      %p297 = pneg %p296
      // Predicated region
      $region75: #{tpu_custom_call.1} parent=5 // pred_check
        _
      $region76: #{tpu_custom_call.1} parent=5 // pred_check_branch
        %299 = sbr.rel (%p296) target = $region78
      $region77: #{tpu_custom_call.1} parent=5 // pred_region
        %s300 = ssub.s32 %s15, 1
        %s301 = sand.u32 %s42, 1
        %s302 = sand.u32 %s42, 1
        %s303 = smul.addr %s302, 32
        %s304 = scalar_lea.vmem [#allocation2], %s303
        // Predicated region
        $region79: #{tpu_custom_call.1} parent=77 // pred_check
          %p305 = pneg %p55
        $region80: #{tpu_custom_call.1} parent=77 // pred_check_branch
          %307 = sbr.rel (%p305) target = $region82
        $region81: #{tpu_custom_call.1} parent=77 // pred_region
          _
        $region82: #{tpu_custom_call.1} parent=77 // pred_fallthru
          _
        %s308 = sand.u32 %s42, 1
        %s309 = sand.u32 %s42, 1
        %s310 = smul.addr %s309, 32
        %s311 = scalar_lea.vmem [#allocation2], %s310
        %p312 = pneg %p55
        %p313 = pneg %p52
        %p314 = scmp.lt.s32.totalorder %s24, 1
        %s315 = scalar_select %p314, %s24, 1
        %p316 = scmp.lt.s32.totalorder %s25, 3
        %s317 = scalar_select %p316, %s25, 3
        %s318 = smul.addr %s317, 4
        %s319 = smul.addr %s315, 16
        %s320 = sadd.s32 %s318, %s319
        %s321 = smul.addr %s320, 8
        %s322 = scalar_lea.vmem %s1, %s321
        %p323 = pneg %p83
        %p324 = pneg %p80
        %p325 = pneg %p104
        %p326 = pneg %p101
        %p327 = pneg %p125
        %p328 = pneg %p122
        %p329 = pneg %p146
        %p330 = pneg %p143
        %p331 = pneg %p167
        %p332 = pneg %p164
        %p333 = pneg %p195
        %p334 = pneg %p192
        %s335 = sand.u32 %s182, 1
        %s336 = scalar_lea.sflag [#allocation4], %s335
        %s337 = sand.u32 %s182, 1
        %s338 = smul.addr %s337, 32
        %s339 = scalar_lea.vmem [#allocation3], %s338
        %p340 = scmp.lt.s32.totalorder %s24, 1
        %s341 = scalar_select %p340, %s24, 1
        %p342 = scmp.lt.s32.totalorder %s25, 3
        %s343 = scalar_select %p342, %s25, 3
        %s344 = smul.addr %s343, 4
        %s345 = smul.addr %s341, 16
        %s346 = sadd.s32 %s344, %s345
        %s347 = smul.addr %s346, 8
        %s348 = scalar_lea.vmem %s1, %s347
        %v349 = vld [vmem:[%s304] sm:$0xff]
        %v350 = vld [vmem:[%s304 + $0x8] sm:$0xff]
        %v351 = vld [vmem:[%s304 + $0x10] sm:$0xff]
        %v352 = vld [vmem:[%s304 + $0x18] sm:$0xff]
        %vm353 = vcmp.gt.f32.partialorder %v349, 0.0
        %vm354 = vcmp.gt.f32.partialorder %v350, 0.0
        %vm355 = vcmp.gt.f32.partialorder %v351, 0.0
        %vm356 = vcmp.gt.f32.partialorder %v352, 0.0
        %v357 = vmul.f32 %v349, 1.442695
        %v358 = vpow.pop %v357
        %v359 = vmul.f32 %v350, 1.442695
        %v360 = vpow.pop %v359
        %v361 = vmul.f32 %v351, 1.442695
        %v362 = vpow.pop %v361
        %v363 = vmul.f32 %v352, 1.442695
        %v364 = vpow.pop %v363
        %v365 = vsub.f32 %v358, 1.0
        %v366 = vsub.f32 %v360, 1.0
        %v367 = vsub.f32 %v362, 1.0
        %v368 = vsub.f32 %v364, 1.0
        %v369 = vsel %vm353, %v349, %v365
        %v370 = vsel %vm354, %v350, %v366
        %v371 = vsel %vm355, %v351, %v367
        %v372 = vsel %vm356, %v352, %v368
        %v373 = vld [vmem:[%s348] sm:$0xff]
        %v374 = vld [vmem:[%s348 + $0x8] sm:$0xff]
        %v375 = vld [vmem:[%s348 + $0x10] sm:$0xff]
        %v376 = vld [vmem:[%s348 + $0x18] sm:$0xff]
        %vm377 = vcmp.gt.f32.partialorder %v373, 0.0
        %vm378 = vcmp.gt.f32.partialorder %v374, 0.0
        %vm379 = vcmp.gt.f32.partialorder %v375, 0.0
        %vm380 = vcmp.gt.f32.partialorder %v376, 0.0
        %v381 = vmul.f32 %v373, 1.442695
        %v382 = vpow.pop %v381
        %v383 = vmul.f32 %v374, 1.442695
        %v384 = vpow.pop %v383
        %v385 = vmul.f32 %v375, 1.442695
        %v386 = vpow.pop %v385
        %v387 = vmul.f32 %v376, 1.442695
        %v388 = vpow.pop %v387
        %v389 = vsub.f32 %v382, 1.0
        %v390 = vsub.f32 %v384, 1.0
        %v391 = vsub.f32 %v386, 1.0
        %v392 = vsub.f32 %v388, 1.0
        %v393 = vsel %vm377, %v373, %v389
        %v394 = vsel %vm378, %v374, %v390
        %v395 = vsel %vm379, %v375, %v391
        %v396 = vsel %vm380, %v376, %v392
        %397 = vrot.lane.b32.xlu0 %v369, 1
        %v398 = vpop.permute.xlu0 %397
        %399 = vrot.lane.b32.xlu0 %v370, 1
        %v400 = vpop.permute.xlu0 %399
        %401 = vrot.lane.b32.xlu0 %v371, 1
        %v402 = vpop.permute.xlu0 %401
        %403 = vrot.lane.b32.xlu0 %v372, 1
        %v404 = vpop.permute.xlu0 %403
        %405 = vrot.lane.b32.xlu0 %v369, 127
        %v406 = vpop.permute.xlu0 %405
        %407 = vrot.lane.b32.xlu0 %v370, 127
        %v408 = vpop.permute.xlu0 %407
        %409 = vrot.lane.b32.xlu0 %v371, 127
        %v410 = vpop.permute.xlu0 %409
        %411 = vrot.lane.b32.xlu0 %v372, 127
        %v412 = vpop.permute.xlu0 %411
        %v413 = vlaneseq
        %v414 = vand.u32 %v413, 127
        %vm415 = vcmp.eq.s32.totalorder %v414, 0
        %v416 = vsel %vm415, 1, 0
        %vm417 = vcmp.eq.s32.totalorder %v416, 1
        %419 = vset.pattern.permute.xlu0 0
        %420 = vperm.xlu0 %419, %v393
        %v421 = vpop.permute.xlu0 %420
        %424 = vset.pattern.permute.xlu0 0
        %425 = vperm.xlu0 %424, %v394
        %v426 = vpop.permute.xlu0 %425
        %429 = vset.pattern.permute.xlu0 0
        %430 = vperm.xlu0 %429, %v395
        %v431 = vpop.permute.xlu0 %430
        %434 = vset.pattern.permute.xlu0 0
        %435 = vperm.xlu0 %434, %v396
        %v436 = vpop.permute.xlu0 %435
        %v438 = vsel %vm417, %v421, %v398
        %v439 = vsel %vm417, %v426, %v400
        %v440 = vsel %vm417, %v431, %v402
        %v441 = vsel %vm417, %v436, %v404
        %vm442 = vcmp.eq.s32.totalorder %v414, 127
        %v443 = vsel %vm442, 1, 0
        %vm444 = vcmp.eq.s32.totalorder %v443, 1
        %445 = vset.pattern.permute.xlu0 1
        %446 = vperm.xlu0 %445, %v393
        %v447 = vpop.permute.xlu0 %446
        %449 = vset.pattern.permute.xlu0 1
        %450 = vperm.xlu0 %449, %v394
        %v451 = vpop.permute.xlu0 %450
        %453 = vset.pattern.permute.xlu0 1
        %454 = vperm.xlu0 %453, %v395
        %v455 = vpop.permute.xlu0 %454
        %457 = vset.pattern.permute.xlu0 1
        %458 = vperm.xlu0 %457, %v396
        %v459 = vpop.permute.xlu0 %458
        %v461 = vsel %vm444, %v447, %v406
        %v462 = vsel %vm444, %v451, %v408
        %v463 = vsel %vm444, %v455, %v410
        %v464 = vsel %vm444, %v459, %v412
        %v465 = vld [vmem:[%s2] sm:$0xff]
        %v466 = vld [vmem:[%s2 + $0x8] sm:$0xff]
        %s467 = scalar_lea.vmem %s2, 16
        %v468 = vld [vmem:[%s467] sm:$0xff]
        %v469 = vld [vmem:[%s467 + $0x8] sm:$0xff]
        %vm470 = vcmask 261120
        %v472 = vsel %vm470, %v468, 0
        %v475 = vsel %vm470, %v469, 0
        %477 = vmatpush.msra.mxu0 0.0
        %478 = vmatpush.msra.mxu0 0.0
        %479 = vmatpush.msra.mxu0 0.0
        %480 = vmatpush.msra.mxu0 0.0
        %481 = vmatpush.msra.mxu0 0.0
        %482 = vmatpush.msra.mxu0 0.0
        %483 = vmatpush.msra.mxu0 0.0
        %484 = vmatpush.msra.mxu0 0.0
        %485 = vmatpush.msra.mxu0 0.0
        %486 = vmatpush.msra.mxu0 0.0
        %487 = vmatpush.msra.mxu0 0.0
        %488 = vmatpush.msra.mxu0 0.0
        %489 = vmatpush.msra.mxu0 %v372
        %490 = vmatpush.msra.mxu0 %v371
        %491 = vmatpush.msra.mxu0 %v370
        %492 = vmatpush.msra.mxu0 %v369
        %493 = vmatmul.f32.gmra.mxu0 %v472
        %v494 = vpop.f32.mrf.mxu0
        %v495 = vadd.f32 0.0, %v494
        %496 = vmatmul.f32.gmra.mxu0 %v475
        %v497 = vpop.f32.mrf.mxu0
        %v498 = vadd.f32 0.0, %v497
        %499 = vdwg.mxu0
        %v501 = vsel %vm470, %v465, 0
        %v504 = vsel %vm470, %v466, 0
        %506 = vmatpush.msra.mxu0 0.0
        %507 = vmatpush.msra.mxu0 0.0
        %508 = vmatpush.msra.mxu0 0.0
        %509 = vmatpush.msra.mxu0 0.0
        %510 = vmatpush.msra.mxu0 0.0
        %511 = vmatpush.msra.mxu0 0.0
        %512 = vmatpush.msra.mxu0 0.0
        %513 = vmatpush.msra.mxu0 0.0
        %514 = vmatpush.msra.mxu0 0.0
        %515 = vmatpush.msra.mxu0 0.0
        %516 = vmatpush.msra.mxu0 0.0
        %517 = vmatpush.msra.mxu0 0.0
        %518 = vmatpush.msra.mxu0 %v441
        %519 = vmatpush.msra.mxu0 %v440
        %520 = vmatpush.msra.mxu0 %v439
        %521 = vmatpush.msra.mxu0 %v438
        %522 = vmatmul.f32.gmra.mxu0 %v501
        %v523 = vpop.f32.mrf.mxu0
        %v524 = vadd.f32 %v495, %v523
        %525 = vmatmul.f32.gmra.mxu0 %v504
        %v526 = vpop.f32.mrf.mxu0
        %v527 = vadd.f32 %v498, %v526
        %528 = vdwg.mxu0
        %s529 = scalar_lea.vmem %s2, 32
        %v530 = vld [vmem:[%s529] sm:$0xff]
        %v531 = vld [vmem:[%s529 + $0x8] sm:$0xff]
        %v533 = vsel %vm470, %v530, 0
        %v536 = vsel %vm470, %v531, 0
        %538 = vmatpush.msra.mxu0 0.0
        %539 = vmatpush.msra.mxu0 0.0
        %540 = vmatpush.msra.mxu0 0.0
        %541 = vmatpush.msra.mxu0 0.0
        %542 = vmatpush.msra.mxu0 0.0
        %543 = vmatpush.msra.mxu0 0.0
        %544 = vmatpush.msra.mxu0 0.0
        %545 = vmatpush.msra.mxu0 0.0
        %546 = vmatpush.msra.mxu0 0.0
        %547 = vmatpush.msra.mxu0 0.0
        %548 = vmatpush.msra.mxu0 0.0
        %549 = vmatpush.msra.mxu0 0.0
        %550 = vmatpush.msra.mxu0 %v464
        %551 = vmatpush.msra.mxu0 %v463
        %552 = vmatpush.msra.mxu0 %v462
        %553 = vmatpush.msra.mxu0 %v461
        %554 = vmatmul.f32.gmra.mxu0 %v533
        %v555 = vpop.f32.mrf.mxu0
        %v556 = vadd.f32 0.0, %v555
        %557 = vmatmul.f32.gmra.mxu0 %v536
        %v558 = vpop.f32.mrf.mxu0
        %v559 = vadd.f32 0.0, %v558
        %560 = vdwg.mxu0
        %v561 = vadd.f32 %v524, %v556
        %v562 = vadd.f32 %v527, %v559
        %v563 = vld [vmem:[%s3] sm:$0xff]
        %v564 = vld [vmem:[%s3 + $0x8] sm:$0xff]
        %566 = vset.pattern.permute.xlu0 0
        %567 = vperm.xlu0 %566, %v563
        %v568 = vpop.permute.xlu0 %567
        %571 = vset.pattern.permute.xlu0 0
        %572 = vperm.xlu0 %571, %v564
        %v573 = vpop.permute.xlu0 %572
        %v575 = vadd.f32 %v561, %v568
        %v576 = vadd.f32 %v562, %v573
        %vm577 = vcmp.gt.f32.partialorder %v575, 0.0
        %vm578 = vcmp.gt.f32.partialorder %v576, 0.0
        %v579 = vmul.f32 %v575, 1.442695
        %v580 = vpow.pop %v579
        %v581 = vmul.f32 %v576, 1.442695
        %v582 = vpow.pop %v581
        %v583 = vsub.f32 %v580, 1.0
        %v584 = vsub.f32 %v582, 1.0
        %v585 = vsel %vm577, %v575, %v583
        %v586 = vsel %vm578, %v576, %v584
        %v587 = vld [vmem:[%s4] sm:$0xff]
        %v588 = vld [vmem:[%s4 + $0x8] sm:$0xff]
        %v589 = vld [vmem:[%s4 + $0x10] sm:$0xff]
        %v590 = vld [vmem:[%s4 + $0x18] sm:$0xff]
        %v591 = vld [vmem:[%s5] sm:$0xff]
        %v592 = vld [vmem:[%s5 + $0x8] sm:$0xff]
        %v593 = vld [vmem:[%s5 + $0x10] sm:$0xff]
        %v594 = vld [vmem:[%s5 + $0x18] sm:$0xff]
        %596 = vset.pattern.permute.xlu0 0
        %597 = vperm.xlu0 %596, %v591
        %v598 = vpop.permute.xlu0 %597
        %601 = vset.pattern.permute.xlu0 0
        %602 = vperm.xlu0 %601, %v592
        %v603 = vpop.permute.xlu0 %602
        %606 = vset.pattern.permute.xlu0 0
        %607 = vperm.xlu0 %606, %v593
        %v608 = vpop.permute.xlu0 %607
        %611 = vset.pattern.permute.xlu0 0
        %612 = vperm.xlu0 %611, %v594
        %v613 = vpop.permute.xlu0 %612
        %vm615 = vcmask 130048
        %v617 = vsel %vm615, %v587, 0
        %v620 = vsel %vm615, %v588, 0
        %v623 = vsel %vm615, %v589, 0
        %v626 = vsel %vm615, %v590, 0
        %628 = vmatpush.msra.mxu0 0.0
        %629 = vmatpush.msra.mxu0 0.0
        %630 = vmatpush.msra.mxu0 0.0
        %631 = vmatpush.msra.mxu0 0.0
        %632 = vmatpush.msra.mxu0 0.0
        %633 = vmatpush.msra.mxu0 0.0
        %634 = vmatpush.msra.mxu0 0.0
        %635 = vmatpush.msra.mxu0 0.0
        %636 = vmatpush.msra.mxu0 0.0
        %637 = vmatpush.msra.mxu0 0.0
        %638 = vmatpush.msra.mxu0 0.0
        %639 = vmatpush.msra.mxu0 0.0
        %640 = vmatpush.msra.mxu0 0.0
        %641 = vmatpush.msra.mxu0 0.0
        %642 = vmatpush.msra.mxu0 %v586
        %643 = vmatpush.msra.mxu0 %v585
        %644 = vmatmul.f32.gmra.mxu0 %v617
        %v645 = vpop.f32.mrf.mxu0
        %v646 = vadd.f32 %v598, %v645
        %647 = vmatmul.f32.gmra.mxu0 %v620
        %v648 = vpop.f32.mrf.mxu0
        %v649 = vadd.f32 %v603, %v648
        %650 = vmatmul.f32.gmra.mxu0 %v623
        %v651 = vpop.f32.mrf.mxu0
        %v652 = vadd.f32 %v608, %v651
        %653 = vmatmul.f32.gmra.mxu0 %v626
        %v654 = vpop.f32.mrf.mxu0
        %v655 = vadd.f32 %v613, %v654
        %656 = vdwg.mxu0
        %v657 = vadd.f32 %v349, %v646
        %v658 = vadd.f32 %v350, %v649
        %v659 = vadd.f32 %v351, %v652
        %v660 = vadd.f32 %v352, %v655
        %661 = vst [vmem:[%s339] sm:$0xff] %v657
        %662 = vst [vmem:[%s339 + $0x8] sm:$0xff] %v658
        %663 = vst [vmem:[%s339 + $0x10] sm:$0xff] %v659
        %664 = vst [vmem:[%s339 + $0x18] sm:$0xff] %v660
        %s665 = sand.u32 %s182, 1
        %s666 = scalar_lea.sflag [#allocation4], %s665
        %s667 = sand.u32 %s182, 1
        %s668 = smul.addr %s667, 32
        %s669 = scalar_lea.vmem [#allocation3], %s668
        // Predicated region
        $region83: #{tpu_custom_call.1} parent=77 // pred_check
          %p670 = pneg %p192
        $region84: #{tpu_custom_call.1} parent=77 // pred_check_branch
          %672 = sbr.rel (%p670) target = $region86
        $region85: #{tpu_custom_call.1} parent=77 // pred_region
          %674 = vsyncadd %s666, 0
          %s675 = smul.addr %s24, 16
          %s676 = sadd.s32 %s25, %s675
          %s677 = smul.addr %s676, 8
          %s678 = scalar_lea.hbm %s6, %s677
          %s679 = sshll.u32 %s669, 4
          %s680 = int_to_ptr.vmem [resolvable:$true] %s679
          %s681 = sshll.u32 %s678, 4
          %s682 = int_to_ptr.hbm [resolvable:$true] %s681
          %687 = dma.vmem_to_hbm [thread:$0]  %s680, 512, %s682, %s666, 128, 512, 8
        $region86: #{tpu_custom_call.1} parent=77 // pred_fallthru
          _
      $region78: #{tpu_custom_call.1} parent=5 // pred_fallthru
        _
      %p688 = scmp.le.s32.totalorder 2, %s15
      // Predicated region
      $region87: #{tpu_custom_call.1} parent=5 // pred_check
        %p689 = pneg %p688
      $region88: #{tpu_custom_call.1} parent=5 // pred_check_branch
        %691 = sbr.rel (%p689) target = $region90
      $region89: #{tpu_custom_call.1} parent=5 // pred_region
        %s692 = ssub.s32 %s15, 2
        // Predicated region
        $region91: #{tpu_custom_call.1} parent=89 // pred_check
          %p693 = pneg %p198
        $region92: #{tpu_custom_call.1} parent=89 // pred_check_branch
          %695 = sbr.rel (%p693) target = $region94
        $region93: #{tpu_custom_call.1} parent=89 // pred_region
          %s696 = sand.u32 %s183, 1
          %s697 = scalar_lea.sflag [#allocation4], %s696
          %s698 = sand.u32 %s183, 1
          %s699 = smul.addr %s698, 32
          %s700 = scalar_lea.vmem [#allocation3], %s699
          %702 = dma.done %s697, 512
        $region94: #{tpu_custom_call.1} parent=89 // pred_fallthru
          _
      $region90: #{tpu_custom_call.1} parent=5 // pred_fallthru
        _
    $region6: #{tpu_custom_call.1} parent=1 // loop_footer
      %s19 = sadd.s32 1, %s15
    $region7: #{tpu_custom_call.1} parent=1 // loop_footer_branch
      %14 = sbr.rel target = $region3
    $region8: #{tpu_custom_call.1} parent=1 // loop_exit
      _
    %703 = vsyncpa [#allocation4], 1
    %s704 = scalar_lea.sflag [#allocation4], 1
    %705 = vsyncpa %s704, 1

</llo_original>
